<compile_context>
chip_gen: v7x
topology: tpu7x:2x2x1
jax: 0.10.0
libtpu: 0.0.40
codegen_flags: <defaults>
</compile_context>

<pallas_src>
import functools
import math

import jax
import jax.numpy as jnp
from jax.experimental import pallas as pl
from jax.experimental.pallas import tpu as pltpu

# Full-f32 matmuls (multi-pass on the MXU) so the kernels match a float32 reference.
MM_PRECISION = jax.lax.Precision.HIGHEST
_GELU_C = math.sqrt(2.0 / math.pi)


# ---------------------------------------------------------------------------
# RotaryEmbedding.forward: freqs = cat([t (x) inv_freq, t (x) inv_freq], -1)
# ---------------------------------------------------------------------------
def _rotary_kernel(inv_freq_ref, out_ref):
    # inv_freq_ref: (1, dim) == cat([inv_freq, inv_freq], -1)  (pre-concatenated on host
    # so the kernel does ONE full-width lane-dense store instead of two masked halves).
    # out_ref:      (TILE_S, dim) tile of the (seq_len, dim) table.
    tile_s, dim = out_ref.shape
    row0 = pl.program_id(0) * tile_s                       # global row offset of this tile
    t = (jax.lax.broadcasted_iota(jnp.int32, (tile_s, dim), 0) + row0).astype(jnp.float32)
    out_ref[...] = t * inv_freq_ref[...]                   # outer product on the VPU


def rotary_embedding(seq_len: int, dim: int, theta: float = 10000.0, tile_s: int = 1024):
    assert dim % 2 == 0, "dim must be even"
    inv_freq = 1.0 / (theta ** (jnp.arange(0, dim, 2, dtype=jnp.float32) / dim))
    inv_freq_full = jnp.concatenate([inv_freq, inv_freq], axis=-1).reshape(1, dim)

    # seq tile: multiple of 8 sublanes; bounded so long contexts keep VMEM small.
    tile_s = min(tile_s, ((seq_len + 7) // 8) * 8)
    grid = (pl.cdiv(seq_len, tile_s),)

    return pl.pallas_call(
        _rotary_kernel,
        out_shape=jax.ShapeDtypeStruct((seq_len, dim), jnp.float32),
        grid=grid,
        in_specs=[pl.BlockSpec((1, dim), lambda i: (0, 0))],
        out_specs=pl.BlockSpec((tile_s, dim), lambda i: (i, 0)),
        compiler_params=pltpu.CompilerParams(
            dimension_semantics=("parallel",),
            vmem_limit_bytes=32 << 20),
        cost_estimate=pl.CostEstimate(
            flops=seq_len * dim, transcendentals=0,
            bytes_accessed=seq_len * dim * 4 + dim * 4),
    )(inv_freq_full)


# ---------------------------------------------------------------------------
# 1x1 Conv1d (conv_q / conv_k / conv_v / conv_o): out[b] = W @ x[b] + bias
# ---------------------------------------------------------------------------
def _pointwise_conv_kernel(x_ref, w_ref, b_ref, o_ref):
    # x_ref: (C_in, T)  w_ref: (C_out, C_in)  b_ref: (C_out, 1)  o_ref: (C_out, T)
    o_ref[...] = (jnp.dot(w_ref[...], x_ref[...],
                          precision=MM_PRECISION,
                          preferred_element_type=jnp.float32)
                  + b_ref[...]).astype(o_ref.dtype)


def pointwise_conv1d(x, w, b):
    B, C_in, T = x.shape
    C_out = w.shape[0]
    return pl.pallas_call(
        _pointwise_conv_kernel,
        out_shape=jax.ShapeDtypeStruct((B, C_out, T), jnp.float32),
        grid=(B,),
        in_specs=[
            pl.BlockSpec((None, C_in, T), lambda i: (i, 0, 0)),
            pl.BlockSpec((C_out, C_in), lambda i: (0, 0)),   # weights resident across grid
            pl.BlockSpec((C_out, 1), lambda i: (0, 0)),
        ],
        out_specs=pl.BlockSpec((None, C_out, T), lambda i: (i, 0, 0)),
        compiler_params=pltpu.CompilerParams(dimension_semantics=("parallel",)),
    )(x, w, b)


# ---------------------------------------------------------------------------
# Fused rotary-PE + masked softmax attention, one (batch, head) per grid step.
# ---------------------------------------------------------------------------
def _rope_attention_kernel(q_ref, k_ref, v_ref, cq_ref, sq_ref, ck_ref, sk_ref,
                           m_ref, o_ref, *, scale):
    q = q_ref[...]                       # (t_t, c)
    k = k_ref[...]                       # (t_s, c)
    v = v_ref[...]                       # (t_s, c)
    c = q.shape[-1]
    half = c // 2

    # rotate_half(x) = cat(-x2, x1) implemented as x @ R with a +/-1 permutation matrix.
    # Exact in f32, runs on the MXU, avoids sub-128-lane concat/shuffle.
    # TODO(synk): for head dims >= 128 use pltpu.roll(x, half, -1) * sign on the XLU instead.
    row = jax.lax.broadcasted_iota(jnp.int32, (c, c), 0)
    col = jax.lax.broadcasted_iota(jnp.int32, (c, c), 1)
    rot = (jnp.where(row == col - half, 1.0, 0.0)
           + jnp.where(row == col + half, -1.0, 0.0))

    def apply_rope(x, cos, sin):
        x_rot = jnp.dot(x, rot, precision=MM_PRECISION,
                        preferred_element_type=jnp.float32)
        return x * cos + x_rot * sin

    qr = apply_rope(q, cq_ref[...], sq_ref[...])
    kr = apply_rope(k, ck_ref[...], sk_ref[...])

    # scores = (q_rot @ k_rot^T) / sqrt(c), masked_fill(mask == 0, -1e4), softmax, @ v
    s = jax.lax.dot_general(qr, kr, (((1,), (1,)), ((), ())),
                            precision=MM_PRECISION,
                            preferred_element_type=jnp.float32) * scale
    s = jnp.where(m_ref[...] == 0.0, -1e4, s)
    s = s - jnp.max(s, axis=-1, keepdims=True)
    e = jnp.exp(s)
    p = e / jnp.sum(e, axis=-1, keepdims=True)
    o_ref[...] = jnp.dot(p, v, precision=MM_PRECISION,
                         preferred_element_type=jnp.float32).astype(o_ref.dtype)


def rotary_attention(q, k, v, cos_q, sin_q, cos_k, sin_k, mask):
    # q: (B,H,t_t,c)  k,v: (B,H,t_s,c)  cos/sin: (t,c)  mask: (B,1,t_t,t_s)
    b, h, t_t, c = q.shape
    t_s = k.shape[2]
    kernel = functools.partial(_rope_attention_kernel, scale=1.0 / math.sqrt(c))
    return pl.pallas_call(
        kernel,
        out_shape=jax.ShapeDtypeStruct((b, h, t_t, c), jnp.float32),
        grid=(b, h),
        in_specs=[
            pl.BlockSpec((None, None, t_t, c), lambda bi, hi: (bi, hi, 0, 0)),
            pl.BlockSpec((None, None, t_s, c), lambda bi, hi: (bi, hi, 0, 0)),
            pl.BlockSpec((None, None, t_s, c), lambda bi, hi: (bi, hi, 0, 0)),
            pl.BlockSpec((t_t, c), lambda bi, hi: (0, 0)),
            pl.BlockSpec((t_t, c), lambda bi, hi: (0, 0)),
            pl.BlockSpec((t_s, c), lambda bi, hi: (0, 0)),
            pl.BlockSpec((t_s, c), lambda bi, hi: (0, 0)),
            pl.BlockSpec((None, None, t_t, t_s), lambda bi, hi: (bi, 0, 0, 0)),
        ],
        out_specs=pl.BlockSpec((None, None, t_t, c), lambda bi, hi: (bi, hi, 0, 0)),
        compiler_params=pltpu.CompilerParams(
            dimension_semantics=("parallel", "parallel")),
    )(q, k, v, cos_q, sin_q, cos_k, sin_k, mask)


def multi_head_attention(x, c, params, n_heads, attn_mask):
    """MultiHeadAttention.forward (inference: dropout = identity, proximal_bias=False)."""
    q = pointwise_conv1d(x, params["wq"], params["bq"])
    k = pointwise_conv1d(c, params["wk"], params["bk"])
    v = pointwise_conv1d(c, params["wv"], params["bv"])

    b, d, t_t = q.shape
    t_s = k.shape[2]
    kc = d // n_heads

    def split_heads(a):                  # 'b (h c) t -> b h t c'
        return a.reshape(b, n_heads, kc, a.shape[-1]).transpose(0, 1, 3, 2)

    qh, kh, vh = split_heads(q), split_heads(k), split_heads(v)

    # Rotary frequency tables from the Pallas kernel; trig applied in the attention kernel
    # via tiny (t, kc) host-side cos/sin tables shared by every (batch, head) grid step.
    freqs_q = rotary_embedding(t_t, kc)
    freqs_k = rotary_embedding(t_s, kc)
    cos_q, sin_q = jnp.cos(freqs_q), jnp.sin(freqs_q)
    cos_k, sin_k = jnp.cos(freqs_k), jnp.sin(freqs_k)

    o = rotary_attention(qh, kh, vh, cos_q, sin_q, cos_k, sin_k, attn_mask)
    o = o.transpose(0, 1, 3, 2).reshape(b, d, t_t)      # 'b h t c -> b (h c) t'
    return pointwise_conv1d(o, params["wo"], params["bo"])


# ---------------------------------------------------------------------------
# FFN.forward (kernel_size=1): mask -> conv1 -> gelu(tanh) -> mask -> conv2 -> mask
# ---------------------------------------------------------------------------
def _ffn_kernel(x_ref, m_ref, w1_ref, b1_ref, w2_ref, b2_ref, o_ref):
    mask = m_ref[...]                                           # (1, T)
    xm = x_ref[...] * mask                                      # (C, T)
    h = jnp.dot(w1_ref[...], xm, precision=MM_PRECISION,
                preferred_element_type=jnp.float32) + b1_ref[...]
    h = 0.5 * h * (1.0 + jnp.tanh(_GELU_C * (h + 0.044715 * h * h * h)))
    h = h * mask
    o = jnp.dot(w2_ref[...], h, precision=MM_PRECISION,
                preferred_element_type=jnp.float32) + b2_ref[...]
    o_ref[...] = (o * mask).astype(o_ref.dtype)


def ffn(x, x_mask, w1, b1, w2, b2):
    B, C, T = x.shape
    F_ = w1.shape[0]
    return pl.pallas_call(
        _ffn_kernel,
        out_shape=jax.ShapeDtypeStruct((B, C, T), jnp.float32),
        grid=(B,),
        in_specs=[
            pl.BlockSpec((None, C, T), lambda i: (i, 0, 0)),
            pl.BlockSpec((None, 1, T), lambda i: (i, 0, 0)),
            pl.BlockSpec((F_, C), lambda i: (0, 0)),
            pl.BlockSpec((F_, 1), lambda i: (0, 0)),
            pl.BlockSpec((C, F_), lambda i: (0, 0)),
            pl.BlockSpec((C, 1), lambda i: (0, 0)),
        ],
        out_specs=pl.BlockSpec((None, C, T), lambda i: (i, 0, 0)),
        compiler_params=pltpu.CompilerParams(dimension_semantics=("parallel",)),
    )(x, x_mask, w1, b1, w2, b2)


# ---------------------------------------------------------------------------
# Pure-JAX references (mirror the PyTorch code path)
# ---------------------------------------------------------------------------
def ref_rotary(seq_len, dim, theta=10000.0):
    inv = 1.0 / (theta ** (jnp.arange(0, dim, 2, dtype=jnp.float32) / dim))
    f = jnp.outer(jnp.arange(seq_len, dtype=jnp.float32), inv)
    return jnp.concatenate([f, f], axis=-1)


def ref_rotate_half(x):
    half = x.shape[-1] // 2
    return jnp.concatenate([-x[..., half:], x[..., :half]], axis=-1)


def ref_apply_rope(pos, t):
    return t * jnp.cos(pos) + ref_rotate_half(t) * jnp.sin(pos)


def ref_pconv(x, w, b):
    return jnp.einsum("oi,bit->bot", w, x, precision=MM_PRECISION) + b[None]


def ref_mha(x, c, p, n_heads, mask):
    q, k, v = (ref_pconv(x, p["wq"], p["bq"]),
               ref_pconv(c, p["wk"], p["bk"]),
               ref_pconv(c, p["wv"], p["bv"]))
    b, d, t_t = q.shape
    kc = d // n_heads

    def split(a):
        return a.reshape(b, n_heads, kc, a.shape[-1]).transpose(0, 1, 3, 2)

    qh, kh, vh = split(q), split(k), split(v)
    qh = ref_apply_rope(ref_rotary(t_t, kc), qh)
    kh = ref_apply_rope(ref_rotary(k.shape[2], kc), kh)
    s = jnp.einsum("bhqc,bhkc->bhqk", qh, kh, precision=MM_PRECISION) / math.sqrt(kc)
    s = jnp.where(mask == 0.0, -1e4, s)
    pa = jax.nn.softmax(s, axis=-1)
    o = jnp.einsum("bhqk,bhkc->bhqc", pa, vh, precision=MM_PRECISION)
    o = o.transpose(0, 1, 3, 2).reshape(b, d, t_t)
    return ref_pconv(o, p["wo"], p["bo"])


def ref_ffn(x, x_mask, w1, b1, w2, b2):
    h = jnp.einsum("oi,bit->bot", w1, x * x_mask, precision=MM_PRECISION) + b1[None]
    h = 0.5 * h * (1.0 + jnp.tanh(_GELU_C * (h + 0.044715 * h ** 3)))
    o = jnp.einsum("oi,bit->bot", w2, h * x_mask, precision=MM_PRECISION) + b2[None]
    return o * x_mask


# ---------------------------------------------------------------------------
if __name__ == "__main__":
    key = jax.random.PRNGKey(0)
    B, C, T = 2, 32, 8          # batch, hidden_channels, decoder length
    H = 4                        # n_heads -> k_channels = 8
    T_ENC = 16                   # encoder length (cross-attention)
    FILTER = 64                  # FFN filter_channels
    THETA = 10000.0

    ks = list(jax.random.split(key, 16))

    def xavier(k, shape):
        fan_out, fan_in = shape
        lim = math.sqrt(6.0 / (fan_in + fan_out))
        return jax.random.uniform(k, shape, jnp.float32, -lim, lim)

    x = jax.random.normal(ks[0], (B, C, T), jnp.float32)
    h_enc = jax.random.normal(ks[1], (B, C, T_ENC), jnp.float32)
    x_mask = jnp.ones((B, 1, T), jnp.float32).at[1, 0, 6:].set(0.0)
    h_mask = jnp.ones((B, 1, T_ENC), jnp.float32).at[0, 0, 12:].set(0.0)

    # Decoder:   self_attn_mask = x_mask.unsqueeze(2) * x_mask.unsqueeze(-1)
    self_attn_mask = x_mask[:, :, None, :] * x_mask[:, :, :, None]       # (B,1,T,T)
    # ConditioningEncoder: attn_mask = cond_mask.unsqueeze(2) * x_mask.unsqueeze(-1)
    cross_attn_mask = h_mask[:, :, None, :] * x_mask[:, :, :, None]      # (B,1,T,T_ENC)

    params = dict(
        wq=xavier(ks[2], (C, C)), bq=0.1 * jax.random.normal(ks[3], (C, 1), jnp.float32),
        wk=xavier(ks[4], (C, C)), bk=0.1 * jax.random.normal(ks[5], (C, 1), jnp.float32),
        wv=xavier(ks[6], (C, C)), bv=0.1 * jax.random.normal(ks[7], (C, 1), jnp.float32),
        wo=xavier(ks[8], (C, C)), bo=0.1 * jax.random.normal(ks[9], (C, 1), jnp.float32),
    )
    w1 = xavier(ks[10], (FILTER, C)); b1 = 0.1 * jax.random.normal(ks[11], (FILTER, 1), jnp.float32)
    w2 = xavier(ks[12], (C, FILTER)); b2 = 0.1 * jax.random.normal(ks[13], (C, 1), jnp.float32)

    # 1) RotaryEmbedding.forward
    kc = C // H
    freqs = jax.block_until_ready(rotary_embedding(T, kc, THETA))
    assert freqs.shape == (T, kc) and freqs.dtype == jnp.float32
    assert jnp.allclose(freqs, ref_rotary(T, kc, THETA), atol=1e-6, rtol=1e-6)
    # multi-tile / non-multiple-of-tile seq grid
    freqs_big = jax.block_until_ready(rotary_embedding(2048 + 40, 64, THETA))
    assert jnp.allclose(freqs_big, ref_rotary(2048 + 40, 64, THETA), atol=1e-4, rtol=1e-6)

    # 2) Self-attention MultiHeadAttention.forward (query source == key/value source)
    xm = x * x_mask
    y_self = jax.block_until_ready(multi_head_attention(xm, xm, params, H, self_attn_mask))
    y_self_ref = ref_mha(xm, xm, params, H, self_attn_mask)
    err = float(jnp.max(jnp.abs(y_self - y_self_ref)))
    assert jnp.allclose(y_self, y_self_ref, atol=1e-3, rtol=1e-3), f"self-attn err={err}"

    # 3) Cross-attention (the MHA inside ConditioningEncoder; t_s != t_t)
    y_cross = jax.block_until_ready(multi_head_attention(xm, h_enc, params, H, cross_attn_mask))
    y_cross_ref = ref_mha(xm, h_enc, params, H, cross_attn_mask)
    err = float(jnp.max(jnp.abs(y_cross - y_cross_ref)))
    assert jnp.allclose(y_cross, y_cross_ref, atol=1e-3, rtol=1e-3), f"cross-attn err={err}"

    # 4) FFN.forward (kernel_size=1)
    y_ffn = jax.block_until_ready(ffn(x, x_mask, w1, b1, w2, b2))
    y_ffn_ref = ref_ffn(x, x_mask, w1, b1, w2, b2)
    err = float(jnp.max(jnp.abs(y_ffn - y_ffn_ref)))
    assert jnp.allclose(y_ffn, y_ffn_ref, atol=1e-3, rtol=1e-3), f"ffn err={err}"

    print("KERNEL_OK")
</pallas_src>

<mosaic_0001>
module attributes {stable_mosaic.version = 11 : i64} {
  func.func @_rotary_kernel(%arg0: i32, %arg1: memref<1x8xf32, #tpu.memory_space<vmem>>, %arg2: memref<8x8xf32, #tpu.memory_space<vmem>>) attributes {dimension_semantics = [#tpu.dimension_semantics<parallel>], iteration_bounds = array<i64: 1>, scalar_prefetch = 0 : i64, scratch_operands = 0 : i64, tpu.core_type = #tpu.core_type<tc>, window_params = [{pipeline_mode = #tpu.pipeline_mode<synchronous>, transform_indices = @transform_0, window_bounds = array<i64: 1, 8>}, {transform_indices = @transform_1, window_bounds = array<i64: 8, 8>}]} {
    %c8_i32 = arith.constant 8 : i32
    %0 = arith.muli %arg0, %c8_i32 : i32
    %1 = tpu.iota {dimensions = array<i32: 0>} : vector<8x8xi32>
    %2 = vector.broadcast %0 : i32 to vector<8x8xi32>
    %3 = arith.addi %1, %2 : vector<8x8xi32>
    %4 = arith.sitofp %3 : vector<8x8xi32> to vector<8x8xf32>
    %c0 = arith.constant 0 : index
    %c0_0 = arith.constant 0 : index
    %5 = vector.load %arg1[%c0, %c0_0] : memref<1x8xf32, #tpu.memory_space<vmem>>, vector<1x8xf32>
    %6 = vector.broadcast %5 : vector<1x8xf32> to vector<8x8xf32>
    %7 = arith.mulf %4, %6 : vector<8x8xf32>
    %c0_1 = arith.constant 0 : index
    %c0_2 = arith.constant 0 : index
    %8 = vector.load %arg2[%c0_1, %c0_2] : memref<8x8xf32, #tpu.memory_space<vmem>>, vector<8x8xf32>
    tpu.vector_store %arg2[%c0_1, %c0_2], %7 {strides = array<i32>} : memref<8x8xf32, #tpu.memory_space<vmem>>, vector<8x8xf32>,
    return
  }
  func.func @transform_0(%arg0: i32) -> (i32, i32) {
    %c0_i32 = arith.constant 0 : i32
    %c0_i32_0 = arith.constant 0 : i32
    %c0_i32_1 = arith.constant 0 : i32
    return %c0_i32, %c0_i32_0 : i32, i32
  }
  func.func @transform_1(%arg0: i32) -> (i32, i32) {
    %c0_i32 = arith.constant 0 : i32
    %c0_i32_0 = arith.constant 0 : i32
    return %arg0, %c0_i32 : i32, i32
  }
}

</mosaic_0001>

<llo_original>
// kernel: tpu_custom_call.1
$region0: #{tpu_custom_call.1}
  #allocation0 [shape = 'u32[]', space=smem, size = 0x4, offset = 0x4, fixed_abs, tag = 'smem constant byte address 0x4 - core index']
  #allocation1 [shape = 'u32[144,128]{1,0:T(1,128)}', space=vmem, size = 0x12000, scoped, tag = 'internal scratch']
  %s0 = inlined_call_operand.hbm [shape: f32[1,8], index: 0, kind: input, shape index: {}]
  %s1 = inlined_call_operand.hbm [shape: f32[8,8], index: 1, kind: output, shape index: {}]
  %s2 = sld [smem:[#allocation0]]
  $region18: #{tpu_custom_call.1} parent=0
    _
  %s4 = ssub.s32 1, %s2
  %s5 = scalar_select 0, %s4, %s2
  $region1: #{tpu_custom_call.1} parent=0
    #allocation2 [shape = 'u8[512]{0}', space=vmem, size = 0x400, scoped, tag = 'input window, operand 0, single buffered']
    #allocation3 [shape = 's32[1]{0}', space=sflag, size = 0x4, scoped, tag = 'scoped memory for tpu_custom_call.1']
    #allocation4 [shape = 's32[1]{0}', space=sflag, size = 0x4, scoped, tag = 'scoped memory for tpu_custom_call.1']
    #allocation5 [shape = 'u8[4096]{0}', space=vmem, size = 0x1000, scoped, tag = 'output window, operand 0, single buffered']
    %6 = vsyncpa [#allocation3], 0
    %7 = vsyncpa [#allocation4], 0
    // Predicated region
    $region2: #{tpu_custom_call.1} parent=1 // pred_check
      _
    $region3: #{tpu_custom_call.1} parent=1 // pred_check_branch
      %9 = sbr.rel (0) target = $region5
    $region4: #{tpu_custom_call.1} parent=1 // pred_region
      %s11 = ssub.s32 16, 16
      %12 = vsyncadd [#allocation3], %s11
      %s14 = sshll.u32 [#allocation2], 4
      %s15 = int_to_ptr.vmem [resolvable:$true] %s14
      %17 = dma.hbm_to_vmem [thread:$0]  %s0, 16, %s15, [#allocation3]
    $region5: #{tpu_custom_call.1} parent=1 // pred_fallthru
      _
    // Predicated region
    $region6: #{tpu_custom_call.1} parent=1 // pred_check
      _
    $region7: #{tpu_custom_call.1} parent=1 // pred_check_branch
      %19 = sbr.rel (0) target = $region9
    $region8: #{tpu_custom_call.1} parent=1 // pred_region
      %20 = dma.done [#allocation3], 16
    $region9: #{tpu_custom_call.1} parent=1 // pred_fallthru
      _
    %s21 = smul.u32 0, 8
    %v22 = vlaneseq
    %v23 = vshrl.u32 %v22, 7
    %v24 = vstv %s21
    %v25 = vadd.s32 %v23, %v24
    %v26 = vcvt.s32.f32 %v25
    %v27 = vld [vmem:[#allocation2] sm:$0x1]
    %v29 = vlaneseq
    %v30 = vshrl.u32 %v29, 7
    %v31 = vsub.s32 0, %v30
    %v32 = vrot.slane %v27, %v31
    %v34 = vmul.f32 %v26, %v32
    %vm35 = vcmask 64512
    %36 = vst.msk [vmem:[#allocation5] sm:$0xff] %vm35, %v34
    // Predicated region
    $region10: #{tpu_custom_call.1} parent=1 // pred_check
      _
    $region11: #{tpu_custom_call.1} parent=1 // pred_check_branch
      %38 = sbr.rel (0) target = $region13
    $region12: #{tpu_custom_call.1} parent=1 // pred_region
      %s40 = ssub.s32 128, 128
      %41 = vsyncadd [#allocation4], %s40
      %s43 = sshll.u32 [#allocation5], 4
      %s44 = int_to_ptr.vmem [resolvable:$true] %s43
      %46 = dma.vmem_to_hbm [thread:$0]  %s44, 128, %s1, [#allocation4]
    $region13: #{tpu_custom_call.1} parent=1 // pred_fallthru
      _
    // Predicated region
    $region14: #{tpu_custom_call.1} parent=1 // pred_check
      _
    $region15: #{tpu_custom_call.1} parent=1 // pred_check_branch
      %48 = sbr.rel (0) target = $region17
    $region16: #{tpu_custom_call.1} parent=1 // pred_region
      %49 = dma.done [#allocation4], 128
    $region17: #{tpu_custom_call.1} parent=1 // pred_fallthru
      _
    %50 = vsyncpa [#allocation3], 1
    %51 = vsyncpa [#allocation4], 1

</llo_original>
